<compile_context>
chip_gen: v5e
topology: v5e:2x2
jax: 0.10.0
libtpu: 0.0.40
codegen_flags: <defaults>
</compile_context>

<pallas_src>
import math
import functools

import jax
import jax.numpy as jnp
from jax.experimental import pallas as pl
from jax.experimental.pallas import tpu as pltpu


def _sa_kernel(x_ref, wqkv_ref, bqkv_ref, wo_ref, bo_ref, o_ref, qkv_ref,
               *, block_b: int, seq_len: int, dim_v: int, num_heads: int):
    mm_dtype = wqkv_ref.dtype                      # bf16 (or f32) MXU operand dtype
    rows = block_b * seq_len
    ds = dim_v // num_heads

    # Fused Q/K/V projection on the whole (rows, dim_in) slab -> VMEM scratch
    # (bounds vreg pressure; per-head tiles are re-loaded as small slices).
    x = x_ref[...].astype(mm_dtype)                # (rows, dim_in)
    qkv = jnp.dot(x, wqkv_ref[...],
                  preferred_element_type=jnp.float32)
    qkv_ref[...] = (qkv + bqkv_ref[...]).reshape(block_b, seq_len, 3 * dim_v)

    head_outs = []
    for h in range(num_heads):                     # static unroll over heads
        qh = qkv_ref[:, :, 0 * dim_v + h * ds: 0 * dim_v + (h + 1) * ds]  # (Bb,N,ds) f32
        kh = qkv_ref[:, :, 1 * dim_v + h * ds: 1 * dim_v + (h + 1) * ds]  # scale folded in
        vh = qkv_ref[:, :, 2 * dim_v + h * ds: 2 * dim_v + (h + 1) * ds]

        # logits = Q K'^T (scale pre-folded into K); contract last dims, batch dim 0.
        logits = jax.lax.dot_general(
            qh.astype(mm_dtype), kh.astype(mm_dtype),
            dimension_numbers=(((2,), (2,)), ((0,), (0,))),
            preferred_element_type=jnp.float32)    # (Bb, N, N)
        logits = logits - jnp.max(logits, axis=-1, keepdims=True)
        p = jnp.exp(logits)
        p = p * pl.reciprocal(jnp.sum(p, axis=-1, keepdims=True), approx=True)

        attn = jax.lax.dot_general(
            p.astype(mm_dtype), vh.astype(mm_dtype),
            dimension_numbers=(((2,), (1,)), ((0,), (0,))),
            preferred_element_type=jnp.float32)    # (Bb, N, ds)

        head_outs.append(qh + attn)                # residual uses exact (un-scaled) Q

    # Single full-width assembly of the head outputs (XLU concat, no masked stores).
    o = jnp.concatenate(head_outs, axis=2).reshape(rows, dim_v)   # f32

    # O = O + relu(fc_o(O)), one full-width store per grid step.
    o_lin = jnp.dot(o.astype(mm_dtype), wo_ref[...],
                    preferred_element_type=jnp.float32) + bo_ref[...]
    o_ref[...] = (o + jnp.maximum(o_lin, 0.0)).astype(o_ref.dtype)


def prepare_sa_params(params, *, num_heads: int, matmul_dtype=jnp.bfloat16):
    """One-time param prep: fuse Wq/Wk/Wv, fold 1/sqrt(dim_V) into K, pre-cast weights."""
    wq, bq, wk, bk, wv, bv, wo, bo = params
    dim_v = wq.shape[1]
    assert dim_v % num_heads == 0
    scale = 1.0 / math.sqrt(float(dim_v))
    # K only feeds the logits, so folding the scale there keeps the Q-residual exact.
    w_qkv = jnp.concatenate([wq, wk * scale, wv], axis=1).astype(matmul_dtype)
    b_qkv = jnp.concatenate([bq, bk * scale, bv], axis=1).astype(jnp.float32)
    return (w_qkv, b_qkv, wo.astype(matmul_dtype), bo.astype(jnp.float32))


def _choose_block_b(B: int, N: int, target_rows: int) -> int:
    """Pick block_b: ~target_rows rows/step, rows % 8 == 0, grid >= 2 when B >= 2."""
    need = 8 // math.gcd(N, 8)                 # block_b multiple -> (block_b*N) % 8 == 0
    bb = max(1, target_rows // N)
    if B >= 2:
        bb = min(bb, pl.cdiv(B, 2))            # keep >= 2 grid steps for v7x's 2 TCs
    bb = max(need, (bb // need) * need)
    return bb


def sa_forward(x, prepared_params, *, num_heads: int,
               block_b: int | None = None, target_rows: int = 1024):
    """x: (B, N, dim_in) float32 -> (B, N, dim_V)."""
    B, N, dim_in = x.shape
    w_qkv, b_qkv, w_o, b_o = prepared_params
    dim_v = w_qkv.shape[1] // 3
    assert dim_v % num_heads == 0

    if block_b is None:
        block_b = _choose_block_b(B, N, target_rows)
    rows = block_b * N
    assert rows % 8 == 0, "block_b * N must be a multiple of 8 (sublane rule)"

    # Pad the batch (instead of requiring a divisor of B); padded rows are
    # computed with zero inputs (finite softmax) and sliced off at the end.
    B_pad = pl.cdiv(B, block_b) * block_b
    if B_pad != B:
        x = jnp.pad(x, ((0, B_pad - B), (0, 0), (0, 0)))
    grid = (B_pad // block_b,)

    x2 = x.reshape(B_pad * N, dim_in)   # lane-dim (dim_in) unchanged; free at XLA level

    kernel = functools.partial(_sa_kernel, block_b=block_b, seq_len=N,
                               dim_v=dim_v, num_heads=num_heads)

    def full_spec(shape):
        return pl.BlockSpec(shape, lambda i: tuple(0 for _ in shape))

    out2 = pl.pallas_call(
        kernel,
        out_shape=jax.ShapeDtypeStruct((B_pad * N, dim_v), x.dtype),
        grid_spec=pltpu.PrefetchScalarGridSpec(
            num_scalar_prefetch=0,
            grid=grid,
            in_specs=[
                pl.BlockSpec((rows, dim_in), lambda i: (i, 0)),
                full_spec(w_qkv.shape),
                full_spec(b_qkv.shape),
                full_spec(w_o.shape),
                full_spec(b_o.shape),
            ],
            out_specs=pl.BlockSpec((rows, dim_v), lambda i: (i, 0)),
            scratch_shapes=[pltpu.VMEM((block_b, N, 3 * dim_v), jnp.float32)],
        ),
        compiler_params=pltpu.CompilerParams(
            dimension_semantics=("parallel",)),
    )(x2, w_qkv, b_qkv, w_o, b_o)

    out = out2.reshape(B_pad, N, dim_v)
    return out[:B] if B_pad != B else out


def sa_reference(x, params, *, num_heads: int, matmul_dtype=jnp.float32):
    """Pure-JAX reference mirroring the PyTorch MAB forward (ln=False).

    matmul_dtype controls the operand precision of the matmuls (f32 accumulate),
    so the same function serves as the exact-f32 spec and as a bf16-matched
    reference for the mixed-precision kernel.
    """
    wq, bq, wk, bk, wv, bv, wo, bo = params
    dim_v = wq.shape[1]

    def mm(a, b):
        return jnp.dot(a.astype(matmul_dtype), b.astype(matmul_dtype),
                       preferred_element_type=jnp.float32)

    q = mm(x, wq) + bq[0]
    k = mm(x, wk) + bk[0]
    v = mm(x, wv) + bv[0]
    # split heads along feature dim, stack along batch like torch.cat(split, 0)
    qh = jnp.concatenate(jnp.split(q, num_heads, axis=2), axis=0)
    kh = jnp.concatenate(jnp.split(k, num_heads, axis=2), axis=0)
    vh = jnp.concatenate(jnp.split(v, num_heads, axis=2), axis=0)
    logits = jnp.einsum('bqd,bkd->bqk', qh.astype(matmul_dtype), kh.astype(matmul_dtype),
                        preferred_element_type=jnp.float32) / math.sqrt(dim_v)
    a = jax.nn.softmax(logits, axis=2)
    o = qh + jnp.einsum('bqk,bkd->bqd', a.astype(matmul_dtype), vh.astype(matmul_dtype),
                        preferred_element_type=jnp.float32)
    o = jnp.concatenate(jnp.split(o, num_heads, axis=0), axis=2)
    o = o + jax.nn.relu(mm(o, wo) + bo[0])
    return o


if __name__ == "__main__":
    dim_in, dim_out, num_heads = 16, 32, 4

    key = jax.random.PRNGKey(0)
    ks = jax.random.split(key, 10)

    def lin(kw, fan_in, fan_out):
        bound = 1.0 / math.sqrt(fan_in)
        return jax.random.uniform(kw, (fan_in, fan_out), jnp.float32, -bound, bound)

    wq = lin(ks[0], dim_in, dim_out)
    wk = lin(ks[1], dim_in, dim_out)
    wv = lin(ks[2], dim_in, dim_out)
    wo = lin(ks[3], dim_out, dim_out)
    bq = jax.random.uniform(ks[4], (1, dim_out), jnp.float32, -0.1, 0.1)
    bk = jax.random.uniform(ks[5], (1, dim_out), jnp.float32, -0.1, 0.1)
    bv = jax.random.uniform(ks[6], (1, dim_out), jnp.float32, -0.1, 0.1)
    bo = jax.random.uniform(ks[7], (1, dim_out), jnp.float32, -0.1, 0.1)
    params = (wq, bq, wk, bk, wv, bv, wo, bo)

    # One-time parameter preparation (fusion + scale folding + bf16 pre-cast).
    prepared = prepare_sa_params(params, num_heads=num_heads, matmul_dtype=jnp.bfloat16)

    # Case 1: small shapes consistent with SA(dim_in, dim_out, num_heads, ln=False).
    B, N = 2, 8
    x = jax.random.normal(ks[8], (B, N, dim_in), jnp.float32)
    out = jax.block_until_ready(sa_forward(x, prepared, num_heads=num_heads))
    assert out.shape == (B, N, dim_out)
    ref_bf16 = sa_reference(x, params, num_heads=num_heads, matmul_dtype=jnp.bfloat16)
    assert jnp.allclose(out, ref_bf16, atol=3e-2, rtol=3e-2), "mismatch vs bf16-matched reference"
    ref_f32 = sa_reference(x, params, num_heads=num_heads, matmul_dtype=jnp.float32)
    assert jnp.allclose(out, ref_f32, atol=1.5e-1, rtol=1.5e-1), "mismatch vs f32 reference"

    # Case 2: awkward batch size (exercises batch padding + multi-element blocks).
    B2 = 7
    x2 = jax.random.normal(ks[9], (B2, N, dim_in), jnp.float32)
    out2 = jax.block_until_ready(sa_forward(x2, prepared, num_heads=num_heads))
    assert out2.shape == (B2, N, dim_out)
    ref2_bf16 = sa_reference(x2, params, num_heads=num_heads, matmul_dtype=jnp.bfloat16)
    assert jnp.allclose(out2, ref2_bf16, atol=3e-2, rtol=3e-2), "mismatch vs bf16-matched reference (padded)"
    ref2_f32 = sa_reference(x2, params, num_heads=num_heads, matmul_dtype=jnp.float32)
    assert jnp.allclose(out2, ref2_f32, atol=1.5e-1, rtol=1.5e-1), "mismatch vs f32 reference (padded)"

    print("KERNEL_OK")
</pallas_src>

<mosaic_0001>
module attributes {stable_mosaic.version = 11 : i64} {
  func.func @_sa_kernel(%arg0: i32, %arg1: memref<8x16xf32, #tpu.memory_space<vmem>>, %arg2: memref<16x96xbf16, #tpu.memory_space<vmem>>, %arg3: memref<1x96xf32, #tpu.memory_space<vmem>>, %arg4: memref<32x32xbf16, #tpu.memory_space<vmem>>, %arg5: memref<1x32xf32, #tpu.memory_space<vmem>>, %arg6: memref<8x32xf32, #tpu.memory_space<vmem>>, %arg7: memref<1x8x96xf32, #tpu.memory_space<vmem>>) attributes {dimension_semantics = [#tpu.dimension_semantics<parallel>], iteration_bounds = array<i64: 2>, scalar_prefetch = 0 : i64, scratch_operands = 1 : i64, tpu.core_type = #tpu.core_type<tc>, window_params = [{transform_indices = @transform_0, window_bounds = array<i64: 8, 16>}, {pipeline_mode = #tpu.pipeline_mode<synchronous>, transform_indices = @transform_1, window_bounds = array<i64: 16, 96>}, {pipeline_mode = #tpu.pipeline_mode<synchronous>, transform_indices = @transform_2, window_bounds = array<i64: 1, 96>}, {pipeline_mode = #tpu.pipeline_mode<synchronous>, transform_indices = @transform_3, window_bounds = array<i64: 32, 32>}, {pipeline_mode = #tpu.pipeline_mode<synchronous>, transform_indices = @transform_4, window_bounds = array<i64: 1, 32>}, {transform_indices = @transform_5, window_bounds = array<i64: 8, 32>}]} {
    %c0 = arith.constant 0 : index
    %c0_0 = arith.constant 0 : index
    %0 = vector.load %arg1[%c0, %c0_0] : memref<8x16xf32, #tpu.memory_space<vmem>>, vector<8x16xf32>
    %1 = arith.truncf %0 : vector<8x16xf32> to vector<8x16xbf16>
    %c0_1 = arith.constant 0 : index
    %c0_2 = arith.constant 0 : index
    %2 = vector.load %arg2[%c0_1, %c0_2] : memref<16x96xbf16, #tpu.memory_space<vmem>>, vector<16x96xbf16>
    %cst = arith.constant dense<0.000000e+00> : vector<8x96xf32>
    %3 = tpu.matmul %1, %2, %cst {dimension_numbers = #tpu.dot_dimension_numbers<[1], [0], [0], [1], [0, 0, 1, 1], [], []>} : vector<8x16xbf16>, vector<16x96xbf16>, vector<8x96xf32> -> vector<8x96xf32>
    %c0_3 = arith.constant 0 : index
    %c0_4 = arith.constant 0 : index
    %4 = vector.load %arg3[%c0_3, %c0_4] : memref<1x96xf32, #tpu.memory_space<vmem>>, vector<1x96xf32>
    %5 = vector.broadcast %4 : vector<1x96xf32> to vector<8x96xf32>
    %6 = arith.addf %3, %5 : vector<8x96xf32>
    %7 = vector.shape_cast %6 : vector<8x96xf32> to vector<1x8x96xf32>
    %c0_5 = arith.constant 0 : index
    %c0_6 = arith.constant 0 : index
    %c0_7 = arith.constant 0 : index
    %8 = vector.load %arg7[%c0_5, %c0_6, %c0_7] : memref<1x8x96xf32, #tpu.memory_space<vmem>>, vector<1x8x96xf32>
    tpu.vector_store %arg7[%c0_5, %c0_6, %c0_7], %7 {strides = array<i32>} : memref<1x8x96xf32, #tpu.memory_space<vmem>>, vector<1x8x96xf32>,
    %c0_8 = arith.constant 0 : index
    %c0_9 = arith.constant 0 : index
    %c0_10 = arith.constant 0 : index
    %9 = vector.load %arg7[%c0_8, %c0_9, %c0_10] : memref<1x8x96xf32, #tpu.memory_space<vmem>>, vector<1x8x8xf32>
    %c0_11 = arith.constant 0 : index
    %c0_12 = arith.constant 0 : index
    %c32 = arith.constant 32 : index
    %10 = vector.load %arg7[%c0_11, %c0_12, %c32] : memref<1x8x96xf32, #tpu.memory_space<vmem>>, vector<1x8x8xf32>
    %c0_13 = arith.constant 0 : index
    %c0_14 = arith.constant 0 : index
    %c64 = arith.constant 64 : index
    %11 = vector.load %arg7[%c0_13, %c0_14, %c64] : memref<1x8x96xf32, #tpu.memory_space<vmem>>, vector<1x8x8xf32>
    %12 = arith.truncf %9 : vector<1x8x8xf32> to vector<1x8x8xbf16>
    %13 = arith.truncf %10 : vector<1x8x8xf32> to vector<1x8x8xbf16>
    %cst_15 = arith.constant dense<0.000000e+00> : vector<1x8x8xf32>
    %14 = tpu.matmul %12, %13, %cst_15 {dimension_numbers = #tpu.dot_dimension_numbers<[2], [2], [1], [1], [0, 0, 0, 1, 1, 1], [0], [0]>} : vector<1x8x8xbf16>, vector<1x8x8xbf16>, vector<1x8x8xf32> -> vector<1x8x8xf32>
    %cst_16 = arith.constant dense<0xFF800000> : vector<1x8xf32>
    %15 = vector.multi_reduction <maximumf>, %14, %cst_16 [2] : vector<1x8x8xf32> to vector<1x8xf32>
    %16 = vector.shape_cast %15 : vector<1x8xf32> to vector<1x8x1xf32>
    %17 = vector.broadcast %16 : vector<1x8x1xf32> to vector<1x8x8xf32>
    %18 = arith.subf %14, %17 : vector<1x8x8xf32>
    %19 = math.exp %18 : vector<1x8x8xf32>
    %cst_17 = arith.constant dense<0.000000e+00> : vector<1x8xf32>
    %20 = vector.multi_reduction <add>, %19, %cst_17 [2] : vector<1x8x8xf32> to vector<1x8xf32>
    %21 = vector.shape_cast %20 : vector<1x8xf32> to vector<1x8x1xf32>
    %22 = tpu.reciprocal %21 {approx = true} : vector<1x8x1xf32> -> vector<1x8x1xf32>
    %23 = vector.broadcast %22 : vector<1x8x1xf32> to vector<1x8x8xf32>
    %24 = arith.mulf %19, %23 : vector<1x8x8xf32>
    %25 = arith.truncf %24 : vector<1x8x8xf32> to vector<1x8x8xbf16>
    %26 = arith.truncf %11 : vector<1x8x8xf32> to vector<1x8x8xbf16>
    %cst_18 = arith.constant dense<0.000000e+00> : vector<1x8x8xf32>
    %27 = tpu.matmul %25, %26, %cst_18 {dimension_numbers = #tpu.dot_dimension_numbers<[2], [1], [1], [2], [0, 0, 0, 1, 1, 2], [0], [0]>} : vector<1x8x8xbf16>, vector<1x8x8xbf16>, vector<1x8x8xf32> -> vector<1x8x8xf32>
    %28 = arith.addf %9, %27 : vector<1x8x8xf32>
    %c0_19 = arith.constant 0 : index
    %c0_20 = arith.constant 0 : index
    %c8 = arith.constant 8 : index
    %29 = vector.load %arg7[%c0_19, %c0_20, %c8] : memref<1x8x96xf32, #tpu.memory_space<vmem>>, vector<1x8x8xf32>
    %c0_21 = arith.constant 0 : index
    %c0_22 = arith.constant 0 : index
    %c40 = arith.constant 40 : index
    %30 = vector.load %arg7[%c0_21, %c0_22, %c40] : memref<1x8x96xf32, #tpu.memory_space<vmem>>, vector<1x8x8xf32>
    %c0_23 = arith.constant 0 : index
    %c0_24 = arith.constant 0 : index
    %c72 = arith.constant 72 : index
    %31 = vector.load %arg7[%c0_23, %c0_24, %c72] : memref<1x8x96xf32, #tpu.memory_space<vmem>>, vector<1x8x8xf32>
    %32 = arith.truncf %29 : vector<1x8x8xf32> to vector<1x8x8xbf16>
    %33 = arith.truncf %30 : vector<1x8x8xf32> to vector<1x8x8xbf16>
    %cst_25 = arith.constant dense<0.000000e+00> : vector<1x8x8xf32>
    %34 = tpu.matmul %32, %33, %cst_25 {dimension_numbers = #tpu.dot_dimension_numbers<[2], [2], [1], [1], [0, 0, 0, 1, 1, 1], [0], [0]>} : vector<1x8x8xbf16>, vector<1x8x8xbf16>, vector<1x8x8xf32> -> vector<1x8x8xf32>
    %cst_26 = arith.constant dense<0xFF800000> : vector<1x8xf32>
    %35 = vector.multi_reduction <maximumf>, %34, %cst_26 [2] : vector<1x8x8xf32> to vector<1x8xf32>
    %36 = vector.shape_cast %35 : vector<1x8xf32> to vector<1x8x1xf32>
    %37 = vector.broadcast %36 : vector<1x8x1xf32> to vector<1x8x8xf32>
    %38 = arith.subf %34, %37 : vector<1x8x8xf32>
    %39 = math.exp %38 : vector<1x8x8xf32>
    %cst_27 = arith.constant dense<0.000000e+00> : vector<1x8xf32>
    %40 = vector.multi_reduction <add>, %39, %cst_27 [2] : vector<1x8x8xf32> to vector<1x8xf32>
    %41 = vector.shape_cast %40 : vector<1x8xf32> to vector<1x8x1xf32>
    %42 = tpu.reciprocal %41 {approx = true} : vector<1x8x1xf32> -> vector<1x8x1xf32>
    %43 = vector.broadcast %42 : vector<1x8x1xf32> to vector<1x8x8xf32>
    %44 = arith.mulf %39, %43 : vector<1x8x8xf32>
    %45 = arith.truncf %44 : vector<1x8x8xf32> to vector<1x8x8xbf16>
    %46 = arith.truncf %31 : vector<1x8x8xf32> to vector<1x8x8xbf16>
    %cst_28 = arith.constant dense<0.000000e+00> : vector<1x8x8xf32>
    %47 = tpu.matmul %45, %46, %cst_28 {dimension_numbers = #tpu.dot_dimension_numbers<[2], [1], [1], [2], [0, 0, 0, 1, 1, 2], [0], [0]>} : vector<1x8x8xbf16>, vector<1x8x8xbf16>, vector<1x8x8xf32> -> vector<1x8x8xf32>
    %48 = arith.addf %29, %47 : vector<1x8x8xf32>
    %c0_29 = arith.constant 0 : index
    %c0_30 = arith.constant 0 : index
    %c16 = arith.constant 16 : index
    %49 = vector.load %arg7[%c0_29, %c0_30, %c16] : memref<1x8x96xf32, #tpu.memory_space<vmem>>, vector<1x8x8xf32>
    %c0_31 = arith.constant 0 : index
    %c0_32 = arith.constant 0 : index
    %c48 = arith.constant 48 : index
    %50 = vector.load %arg7[%c0_31, %c0_32, %c48] : memref<1x8x96xf32, #tpu.memory_space<vmem>>, vector<1x8x8xf32>
    %c0_33 = arith.constant 0 : index
    %c0_34 = arith.constant 0 : index
    %c80 = arith.constant 80 : index
    %51 = vector.load %arg7[%c0_33, %c0_34, %c80] : memref<1x8x96xf32, #tpu.memory_space<vmem>>, vector<1x8x8xf32>
    %52 = arith.truncf %49 : vector<1x8x8xf32> to vector<1x8x8xbf16>
    %53 = arith.truncf %50 : vector<1x8x8xf32> to vector<1x8x8xbf16>
    %cst_35 = arith.constant dense<0.000000e+00> : vector<1x8x8xf32>
    %54 = tpu.matmul %52, %53, %cst_35 {dimension_numbers = #tpu.dot_dimension_numbers<[2], [2], [1], [1], [0, 0, 0, 1, 1, 1], [0], [0]>} : vector<1x8x8xbf16>, vector<1x8x8xbf16>, vector<1x8x8xf32> -> vector<1x8x8xf32>
    %cst_36 = arith.constant dense<0xFF800000> : vector<1x8xf32>
    %55 = vector.multi_reduction <maximumf>, %54, %cst_36 [2] : vector<1x8x8xf32> to vector<1x8xf32>
    %56 = vector.shape_cast %55 : vector<1x8xf32> to vector<1x8x1xf32>
    %57 = vector.broadcast %56 : vector<1x8x1xf32> to vector<1x8x8xf32>
    %58 = arith.subf %54, %57 : vector<1x8x8xf32>
    %59 = math.exp %58 : vector<1x8x8xf32>
    %cst_37 = arith.constant dense<0.000000e+00> : vector<1x8xf32>
    %60 = vector.multi_reduction <add>, %59, %cst_37 [2] : vector<1x8x8xf32> to vector<1x8xf32>
    %61 = vector.shape_cast %60 : vector<1x8xf32> to vector<1x8x1xf32>
    %62 = tpu.reciprocal %61 {approx = true} : vector<1x8x1xf32> -> vector<1x8x1xf32>
    %63 = vector.broadcast %62 : vector<1x8x1xf32> to vector<1x8x8xf32>
    %64 = arith.mulf %59, %63 : vector<1x8x8xf32>
    %65 = arith.truncf %64 : vector<1x8x8xf32> to vector<1x8x8xbf16>
    %66 = arith.truncf %51 : vector<1x8x8xf32> to vector<1x8x8xbf16>
    %cst_38 = arith.constant dense<0.000000e+00> : vector<1x8x8xf32>
    %67 = tpu.matmul %65, %66, %cst_38 {dimension_numbers = #tpu.dot_dimension_numbers<[2], [1], [1], [2], [0, 0, 0, 1, 1, 2], [0], [0]>} : vector<1x8x8xbf16>, vector<1x8x8xbf16>, vector<1x8x8xf32> -> vector<1x8x8xf32>
    %68 = arith.addf %49, %67 : vector<1x8x8xf32>
    %c0_39 = arith.constant 0 : index
    %c0_40 = arith.constant 0 : index
    %c24 = arith.constant 24 : index
    %69 = vector.load %arg7[%c0_39, %c0_40, %c24] : memref<1x8x96xf32, #tpu.memory_space<vmem>>, vector<1x8x8xf32>
    %c0_41 = arith.constant 0 : index
    %c0_42 = arith.constant 0 : index
    %c56 = arith.constant 56 : index
    %70 = vector.load %arg7[%c0_41, %c0_42, %c56] : memref<1x8x96xf32, #tpu.memory_space<vmem>>, vector<1x8x8xf32>
    %c0_43 = arith.constant 0 : index
    %c0_44 = arith.constant 0 : index
    %c88 = arith.constant 88 : index
    %71 = vector.load %arg7[%c0_43, %c0_44, %c88] : memref<1x8x96xf32, #tpu.memory_space<vmem>>, vector<1x8x8xf32>
    %72 = arith.truncf %69 : vector<1x8x8xf32> to vector<1x8x8xbf16>
    %73 = arith.truncf %70 : vector<1x8x8xf32> to vector<1x8x8xbf16>
    %cst_45 = arith.constant dense<0.000000e+00> : vector<1x8x8xf32>
    %74 = tpu.matmul %72, %73, %cst_45 {dimension_numbers = #tpu.dot_dimension_numbers<[2], [2], [1], [1], [0, 0, 0, 1, 1, 1], [0], [0]>} : vector<1x8x8xbf16>, vector<1x8x8xbf16>, vector<1x8x8xf32> -> vector<1x8x8xf32>
    %cst_46 = arith.constant dense<0xFF800000> : vector<1x8xf32>
    %75 = vector.multi_reduction <maximumf>, %74, %cst_46 [2] : vector<1x8x8xf32> to vector<1x8xf32>
    %76 = vector.shape_cast %75 : vector<1x8xf32> to vector<1x8x1xf32>
    %77 = vector.broadcast %76 : vector<1x8x1xf32> to vector<1x8x8xf32>
    %78 = arith.subf %74, %77 : vector<1x8x8xf32>
    %79 = math.exp %78 : vector<1x8x8xf32>
    %cst_47 = arith.constant dense<0.000000e+00> : vector<1x8xf32>
    %80 = vector.multi_reduction <add>, %79, %cst_47 [2] : vector<1x8x8xf32> to vector<1x8xf32>
    %81 = vector.shape_cast %80 : vector<1x8xf32> to vector<1x8x1xf32>
    %82 = tpu.reciprocal %81 {approx = true} : vector<1x8x1xf32> -> vector<1x8x1xf32>
    %83 = vector.broadcast %82 : vector<1x8x1xf32> to vector<1x8x8xf32>
    %84 = arith.mulf %79, %83 : vector<1x8x8xf32>
    %85 = arith.truncf %84 : vector<1x8x8xf32> to vector<1x8x8xbf16>
    %86 = arith.truncf %71 : vector<1x8x8xf32> to vector<1x8x8xbf16>
    %cst_48 = arith.constant dense<0.000000e+00> : vector<1x8x8xf32>
    %87 = tpu.matmul %85, %86, %cst_48 {dimension_numbers = #tpu.dot_dimension_numbers<[2], [1], [1], [2], [0, 0, 0, 1, 1, 2], [0], [0]>} : vector<1x8x8xbf16>, vector<1x8x8xbf16>, vector<1x8x8xf32> -> vector<1x8x8xf32>
    %88 = arith.addf %69, %87 : vector<1x8x8xf32>
    %89 = tpu.concatenate %28, %48, %68, %88 in 2 : vector<1x8x8xf32>, vector<1x8x8xf32>, vector<1x8x8xf32>, vector<1x8x8xf32> -> vector<1x8x32xf32>
    %90 = vector.shape_cast %89 : vector<1x8x32xf32> to vector<8x32xf32>
    %91 = arith.truncf %90 : vector<8x32xf32> to vector<8x32xbf16>
    %c0_49 = arith.constant 0 : index
    %c0_50 = arith.constant 0 : index
    %92 = vector.load %arg4[%c0_49, %c0_50] : memref<32x32xbf16, #tpu.memory_space<vmem>>, vector<32x32xbf16>
    %cst_51 = arith.constant dense<0.000000e+00> : vector<8x32xf32>
    %93 = tpu.matmul %91, %92, %cst_51 {dimension_numbers = #tpu.dot_dimension_numbers<[1], [0], [0], [1], [0, 0, 1, 1], [], []>} : vector<8x32xbf16>, vector<32x32xbf16>, vector<8x32xf32> -> vector<8x32xf32>
    %c0_52 = arith.constant 0 : index
    %c0_53 = arith.constant 0 : index
    %94 = vector.load %arg5[%c0_52, %c0_53] : memref<1x32xf32, #tpu.memory_space<vmem>>, vector<1x32xf32>
    %95 = vector.broadcast %94 : vector<1x32xf32> to vector<8x32xf32>
    %96 = arith.addf %93, %95 : vector<8x32xf32>
    %cst_54 = arith.constant 0.000000e+00 : f32
    %97 = vector.broadcast %cst_54 : f32 to vector<8x32xf32>
    %98 = arith.maximumf %96, %97 : vector<8x32xf32>
    %99 = arith.addf %90, %98 : vector<8x32xf32>
    %c0_55 = arith.constant 0 : index
    %c0_56 = arith.constant 0 : index
    %100 = vector.load %arg6[%c0_55, %c0_56] : memref<8x32xf32, #tpu.memory_space<vmem>>, vector<8x32xf32>
    tpu.vector_store %arg6[%c0_55, %c0_56], %99 {strides = array<i32>} : memref<8x32xf32, #tpu.memory_space<vmem>>, vector<8x32xf32>,
    return
  }
  func.func @transform_0(%arg0: i32) -> (i32, i32) {
    %c0_i32 = arith.constant 0 : i32
    %c0_i32_0 = arith.constant 0 : i32
    return %arg0, %c0_i32 : i32, i32
  }
  func.func @transform_1(%arg0: i32) -> (i32, i32) {
    %c0_i32 = arith.constant 0 : i32
    %c0_i32_0 = arith.constant 0 : i32
    %c0_i32_1 = arith.constant 0 : i32
    return %c0_i32, %c0_i32_0 : i32, i32
  }
  func.func @transform_2(%arg0: i32) -> (i32, i32) {
    %c0_i32 = arith.constant 0 : i32
    %c0_i32_0 = arith.constant 0 : i32
    %c0_i32_1 = arith.constant 0 : i32
    return %c0_i32, %c0_i32_0 : i32, i32
  }
  func.func @transform_3(%arg0: i32) -> (i32, i32) {
    %c0_i32 = arith.constant 0 : i32
    %c0_i32_0 = arith.constant 0 : i32
    %c0_i32_1 = arith.constant 0 : i32
    return %c0_i32, %c0_i32_0 : i32, i32
  }
  func.func @transform_4(%arg0: i32) -> (i32, i32) {
    %c0_i32 = arith.constant 0 : i32
    %c0_i32_0 = arith.constant 0 : i32
    %c0_i32_1 = arith.constant 0 : i32
    return %c0_i32, %c0_i32_0 : i32, i32
  }
  func.func @transform_5(%arg0: i32) -> (i32, i32) {
    %c0_i32 = arith.constant 0 : i32
    %c0_i32_0 = arith.constant 0 : i32
    return %arg0, %c0_i32 : i32, i32
  }
}

</mosaic_0001>

<llo_original>
// kernel: tpu_custom_call.1
$region0: #{tpu_custom_call.1}
  #allocation0 [shape = 'u32[]', space=smem, size = 0x4, offset = 0x4, fixed_abs, tag = 'smem constant byte address 0x4 - core index']
  #allocation1 [shape = 'u32[72,128]{1,0:T(1,128)}', space=vmem, size = 0x9000, scoped, tag = 'internal scratch']
  #allocation2 [shape = 'f32[1,8,96]{2,1,0:T(8,128)}', space=vmem, size = 0x1000, scoped, tag = 'scratch operand']
  %s0 = inlined_call_operand.hbm [shape: f32[16,16], index: 0, kind: input, shape index: {}]
  %s1 = inlined_call_operand.hbm [shape: bf16[16,96], index: 1, kind: input, shape index: {}]
  %s2 = inlined_call_operand.vmem [shape: f32[1,96], index: 2, kind: input, shape index: {}]
  %s3 = inlined_call_operand.hbm [shape: bf16[32,32], index: 3, kind: input, shape index: {}]
  %s4 = inlined_call_operand.vmem [shape: f32[1,32], index: 4, kind: input, shape index: {}]
  %s5 = inlined_call_operand.hbm [shape: f32[16,32], index: 5, kind: output, shape index: {}]
  %s6 = sld [smem:[#allocation0]]
  $region65: #{tpu_custom_call.1} parent=0
    _
  %s8 = ssub.s32 1, %s6
  %s9 = scalar_select 0, %s8, %s6
  $region1: #{tpu_custom_call.1} parent=0
    #allocation3 [shape = 'u8[8192]{0}', space=vmem, size = 0x2000, scoped, tag = 'input window, operand 0']
    #allocation4 [shape = 's32[2]{0}', space=sflag, size = 0x8, scoped, tag = 'scoped memory for tpu_custom_call.1']
    #allocation5 [shape = 's32[2]{0}', space=sflag, size = 0x8, scoped, tag = 'scoped memory for tpu_custom_call.1']
    #allocation6 [shape = 'u8[4096]{0}', space=vmem, size = 0x1000, scoped, tag = 'input window, operand 1, single buffered']
    #allocation7 [shape = 's32[1]{0}', space=sflag, size = 0x4, scoped, tag = 'scoped memory for tpu_custom_call.1']
    #allocation8 [shape = 'u8[8192]{0}', space=vmem, size = 0x2000, scoped, tag = 'input window, operand 3, single buffered']
    #allocation9 [shape = 'u8[8192]{0}', space=vmem, size = 0x2000, scoped, tag = 'output window, operand 0']
    %10 = vsyncpa [#allocation4], 0
    %s11 = scalar_lea.sflag [#allocation4], 1
    %12 = vsyncpa %s11, 0
    %13 = vsyncpa [#allocation7], 0
    %14 = vsyncpa [#allocation5], 0
    %s15 = scalar_lea.sflag [#allocation5], 1
    %16 = vsyncpa %s15, 0
    loop: start=0, step=1, limit=4
    $region2: #{tpu_custom_call.1} parent=1 // loop_pre_header
      _
    $region3: #{tpu_custom_call.1} parent=1 // loop_header
      %s18 = sphi 0, %s22
      %p19 = scmp.ge.s32.totalorder %s18, 4
      %s28 = sphi 0, %s30
      %s31 = sphi 0, %s28
      %s32 = sphi 0, %s31
      %s48 = sphi 0, %s32
      %s52 = sphi 0, %s52
      %s54 = sphi 0, %s52
      %s55 = sphi 0, %s54
      %s69 = sphi 0, %s55
      %s73 = sphi 0, %s73
      %s75 = sphi 0, %s73
      %s76 = sphi 0, %s75
      %s90 = sphi 0, %s76
      %s94 = sphi 0, %s94
      %s96 = sphi 0, %s94
      %s97 = sphi 0, %s96
      %s111 = sphi 0, %s97
      %s115 = sphi 0, %s115
      %s117 = sphi 0, %s115
      %s118 = sphi 0, %s117
      %s132 = sphi 0, %s118
      %s138 = sphi 0, %s140
      %s141 = sphi 0, %s138
      %s142 = sphi 0, %s141
      %s158 = sphi 0, %s142
    $region4: #{tpu_custom_call.1} parent=1 // loop_header_branch
      %21 = sbr.rel (%p19) target = $region8
    $region5: #{tpu_custom_call.1} parent=1 // loop_body
      %s23 = ssub.s32 %s18, 1
      %s24 = ssub.s32 %s18, 2
      %s25 = sadd.s32 %s18, 1
      %s26 = ssub.s32 %s18, %s25
      %p27 = scmp.eq.s32.totalorder %s26, 0
      %s29 = sadd.s32 %s28, 1
      %s30 = scalar_select %p27, %s28, %s29
      %p33 = pneg %p27
      %p34 = scmp.eq.s32.totalorder %s18, 1
      %p35 = por %p33, %p34
      %p36 = scmp.ne.s32.totalorder %s28, %s31
      %p37 = scmp.eq.s32.totalorder %s18, 0
      %p38 = por %p36, %p37
      %p39 = scmp.ne.s32.totalorder %s28, %s31
      %p40 = scmp.eq.s32.totalorder %s23, 1
      %p41 = por %p39, %p40
      %p42 = scmp.ne.s32.totalorder %s31, %s32
      %p43 = scmp.eq.s32.totalorder %s23, 0
      %p44 = por %p42, %p43
      %p45 = scmp.ne.s32.totalorder %s31, %s32
      %p46 = scmp.eq.s32.totalorder %s24, 1
      %p47 = por %p45, %p46
      %p49 = scmp.ne.s32.totalorder %s32, %s48
      %p50 = scmp.eq.s32.totalorder %s24, 0
      %p51 = por %p49, %p50
      %s53 = sadd.s32 %s52, 1
      %p56 = scmp.eq.s32.totalorder %s18, 1
      %p57 = scmp.ne.s32.totalorder %s52, %s54
      %p58 = scmp.eq.s32.totalorder %s18, 0
      %p59 = por %p57, %p58
      %p60 = scmp.ne.s32.totalorder %s52, %s54
      %p61 = scmp.eq.s32.totalorder %s23, 1
      %p62 = por %p60, %p61
      %p63 = scmp.ne.s32.totalorder %s54, %s55
      %p64 = scmp.eq.s32.totalorder %s23, 0
      %p65 = por %p63, %p64
      %p66 = scmp.ne.s32.totalorder %s54, %s55
      %p67 = scmp.eq.s32.totalorder %s24, 1
      %p68 = por %p66, %p67
      %p70 = scmp.ne.s32.totalorder %s55, %s69
      %p71 = scmp.eq.s32.totalorder %s24, 0
      %p72 = por %p70, %p71
      %s74 = sadd.s32 %s73, 1
      %p77 = scmp.eq.s32.totalorder %s18, 1
      %p78 = scmp.ne.s32.totalorder %s73, %s75
      %p79 = scmp.eq.s32.totalorder %s18, 0
      %p80 = por %p78, %p79
      %p81 = scmp.ne.s32.totalorder %s73, %s75
      %p82 = scmp.eq.s32.totalorder %s23, 1
      %p83 = por %p81, %p82
      %p84 = scmp.ne.s32.totalorder %s75, %s76
      %p85 = scmp.eq.s32.totalorder %s23, 0
      %p86 = por %p84, %p85
      %p87 = scmp.ne.s32.totalorder %s75, %s76
      %p88 = scmp.eq.s32.totalorder %s24, 1
      %p89 = por %p87, %p88
      %p91 = scmp.ne.s32.totalorder %s76, %s90
      %p92 = scmp.eq.s32.totalorder %s24, 0
      %p93 = por %p91, %p92
      %s95 = sadd.s32 %s94, 1
      %p98 = scmp.eq.s32.totalorder %s18, 1
      %p99 = scmp.ne.s32.totalorder %s94, %s96
      %p100 = scmp.eq.s32.totalorder %s18, 0
      %p101 = por %p99, %p100
      %p102 = scmp.ne.s32.totalorder %s94, %s96
      %p103 = scmp.eq.s32.totalorder %s23, 1
      %p104 = por %p102, %p103
      %p105 = scmp.ne.s32.totalorder %s96, %s97
      %p106 = scmp.eq.s32.totalorder %s23, 0
      %p107 = por %p105, %p106
      %p108 = scmp.ne.s32.totalorder %s96, %s97
      %p109 = scmp.eq.s32.totalorder %s24, 1
      %p110 = por %p108, %p109
      %p112 = scmp.ne.s32.totalorder %s97, %s111
      %p113 = scmp.eq.s32.totalorder %s24, 0
      %p114 = por %p112, %p113
      %s116 = sadd.s32 %s115, 1
      %p119 = scmp.eq.s32.totalorder %s18, 1
      %p120 = scmp.ne.s32.totalorder %s115, %s117
      %p121 = scmp.eq.s32.totalorder %s18, 0
      %p122 = por %p120, %p121
      %p123 = scmp.ne.s32.totalorder %s115, %s117
      %p124 = scmp.eq.s32.totalorder %s23, 1
      %p125 = por %p123, %p124
      %p126 = scmp.ne.s32.totalorder %s117, %s118
      %p127 = scmp.eq.s32.totalorder %s23, 0
      %p128 = por %p126, %p127
      %p129 = scmp.ne.s32.totalorder %s117, %s118
      %p130 = scmp.eq.s32.totalorder %s24, 1
      %p131 = por %p129, %p130
      %p133 = scmp.ne.s32.totalorder %s118, %s132
      %p134 = scmp.eq.s32.totalorder %s24, 0
      %p135 = por %p133, %p134
      %s136 = ssub.s32 %s18, %s25
      %p137 = scmp.eq.s32.totalorder %s136, 0
      %s139 = sadd.s32 %s138, 1
      %s140 = scalar_select %p137, %s138, %s139
      %p143 = pneg %p137
      %p144 = scmp.eq.s32.totalorder %s18, 1
      %p145 = por %p143, %p144
      %p146 = scmp.ne.s32.totalorder %s138, %s141
      %p147 = scmp.eq.s32.totalorder %s18, 0
      %p148 = por %p146, %p147
      %p149 = scmp.ne.s32.totalorder %s138, %s141
      %p150 = scmp.eq.s32.totalorder %s23, 1
      %p151 = por %p149, %p150
      %p152 = scmp.ne.s32.totalorder %s141, %s142
      %p153 = scmp.eq.s32.totalorder %s23, 0
      %p154 = por %p152, %p153
      %p155 = scmp.ne.s32.totalorder %s141, %s142
      %p156 = scmp.eq.s32.totalorder %s24, 1
      %p157 = por %p155, %p156
      %p159 = scmp.ne.s32.totalorder %s142, %s158
      %p160 = scmp.eq.s32.totalorder %s24, 0
      %p161 = por %p159, %p160
      %p162 = scmp.le.s32.totalorder 1, %s18
      %p163 = scmp.lt.s32.totalorder %s18, 3
      %p164 = pnand %p162, %p163
      %p165 = pneg %p164
      // Predicated region
      $region9: #{tpu_custom_call.1} parent=5 // pred_check
        _
      $region10: #{tpu_custom_call.1} parent=5 // pred_check_branch
        %167 = sbr.rel (%p164) target = $region12
      $region11: #{tpu_custom_call.1} parent=5 // pred_region
        %s168 = ssub.s32 %s18, 1
        // Predicated region
        $region13: #{tpu_custom_call.1} parent=11 // pred_check
          %p169 = pneg %p65
        $region14: #{tpu_custom_call.1} parent=11 // pred_check_branch
          %171 = sbr.rel (%p169) target = $region16
        $region15: #{tpu_custom_call.1} parent=11 // pred_region
          %173 = vsyncadd [#allocation7], 0
          %s174 = sshll.u32 %s1, 4
          %s175 = int_to_ptr.hbm [resolvable:$true] %s174
          %s176 = sshll.u32 [#allocation6], 4
          %s177 = int_to_ptr.vmem [resolvable:$true] %s176
          %182 = dma.hbm_to_vmem [thread:$0]  %s175, 128, %s177, [#allocation7], 64, 64, 4
        $region16: #{tpu_custom_call.1} parent=11 // pred_fallthru
          _
        // Predicated region
        $region17: #{tpu_custom_call.1} parent=11 // pred_check
          %p183 = pneg %p86
        $region18: #{tpu_custom_call.1} parent=11 // pred_check_branch
          %185 = sbr.rel (%p183) target = $region20
        $region19: #{tpu_custom_call.1} parent=11 // pred_region
          _
        $region20: #{tpu_custom_call.1} parent=11 // pred_fallthru
          _
        // Predicated region
        $region21: #{tpu_custom_call.1} parent=11 // pred_check
          %p186 = pneg %p107
        $region22: #{tpu_custom_call.1} parent=11 // pred_check_branch
          %188 = sbr.rel (%p186) target = $region24
        $region23: #{tpu_custom_call.1} parent=11 // pred_region
          %190 = vsyncadd [#allocation7], 0
          %s191 = sshll.u32 %s3, 4
          %s192 = int_to_ptr.hbm [resolvable:$true] %s191
          %s193 = sshll.u32 [#allocation8], 4
          %s194 = int_to_ptr.vmem [resolvable:$true] %s193
          %199 = dma.hbm_to_vmem [thread:$0]  %s192, 256, %s194, [#allocation7], 64, 64, 4
        $region24: #{tpu_custom_call.1} parent=11 // pred_fallthru
          _
        // Predicated region
        $region25: #{tpu_custom_call.1} parent=11 // pred_check
          %p200 = pneg %p128
        $region26: #{tpu_custom_call.1} parent=11 // pred_check_branch
          %202 = sbr.rel (%p200) target = $region28
        $region27: #{tpu_custom_call.1} parent=11 // pred_region
          _
        $region28: #{tpu_custom_call.1} parent=11 // pred_fallthru
          _
      $region12: #{tpu_custom_call.1} parent=5 // pred_fallthru
        _
      %p203 = scmp.lt.s32.totalorder %s18, 2
      // Predicated region
      $region29: #{tpu_custom_call.1} parent=5 // pred_check
        %p204 = pneg %p203
      $region30: #{tpu_custom_call.1} parent=5 // pred_check_branch
        %206 = sbr.rel (%p204) target = $region32
      $region31: #{tpu_custom_call.1} parent=5 // pred_region
        // Predicated region
        $region33: #{tpu_custom_call.1} parent=31 // pred_check
          %p207 = pneg %p38
        $region34: #{tpu_custom_call.1} parent=31 // pred_check_branch
          %209 = sbr.rel (%p207) target = $region36
        $region35: #{tpu_custom_call.1} parent=31 // pred_region
          %s210 = sand.u32 %s28, 1
          %s211 = scalar_lea.sflag [#allocation4], %s210
          %s212 = sand.u32 %s28, 1
          %s213 = smul.addr %s212, 8
          %s214 = scalar_lea.vmem [#allocation3], %s213
          %216 = vsyncadd %s211, 0
          %s217 = smul.addr %s18, 8
          %s218 = scalar_lea.hbm %s0, %s217
          %s220 = sshll.u32 %s218, 4
          %s221 = int_to_ptr.hbm [resolvable:$true] %s220
          %s222 = sshll.u32 %s214, 4
          %s223 = int_to_ptr.vmem [resolvable:$true] %s222
          %225 = dma.hbm_to_vmem [thread:$0]  %s221, 128, %s223, %s211
        $region36: #{tpu_custom_call.1} parent=31 // pred_fallthru
          _
      $region32: #{tpu_custom_call.1} parent=5 // pred_fallthru
        _
      %p226 = scmp.le.s32.totalorder 1, %s18
      %p227 = scmp.lt.s32.totalorder %s18, 3
      %p228 = pnand %p226, %p227
      %p229 = pneg %p228
      // Predicated region
      $region37: #{tpu_custom_call.1} parent=5 // pred_check
        _
      $region38: #{tpu_custom_call.1} parent=5 // pred_check_branch
        %231 = sbr.rel (%p228) target = $region40
      $region39: #{tpu_custom_call.1} parent=5 // pred_region
        %s232 = ssub.s32 %s18, 1
        %s233 = sand.u32 %s31, 1
        %s234 = scalar_lea.sflag [#allocation4], %s233
        %s235 = sand.u32 %s31, 1
        %s236 = smul.addr %s235, 8
        %s237 = scalar_lea.vmem [#allocation3], %s236
        // Predicated region
        $region41: #{tpu_custom_call.1} parent=39 // pred_check
          %p238 = pneg %p44
        $region42: #{tpu_custom_call.1} parent=39 // pred_check_branch
          %240 = sbr.rel (%p238) target = $region44
        $region43: #{tpu_custom_call.1} parent=39 // pred_region
          %242 = dma.done %s234, 128
        $region44: #{tpu_custom_call.1} parent=39 // pred_fallthru
          _
        // Predicated region
        $region45: #{tpu_custom_call.1} parent=39 // pred_check
          %p243 = pneg %p65
        $region46: #{tpu_custom_call.1} parent=39 // pred_check_branch
          %245 = sbr.rel (%p243) target = $region48
        $region47: #{tpu_custom_call.1} parent=39 // pred_region
          %247 = dma.done [#allocation7], 128
        $region48: #{tpu_custom_call.1} parent=39 // pred_fallthru
          _
        // Predicated region
        $region49: #{tpu_custom_call.1} parent=39 // pred_check
          %p248 = pneg %p107
        $region50: #{tpu_custom_call.1} parent=39 // pred_check_branch
          %250 = sbr.rel (%p248) target = $region52
        $region51: #{tpu_custom_call.1} parent=39 // pred_region
          %252 = dma.done [#allocation7], 256
        $region52: #{tpu_custom_call.1} parent=39 // pred_fallthru
          _
        %s253 = sand.u32 %s31, 1
        %s254 = scalar_lea.sflag [#allocation4], %s253
        %s255 = sand.u32 %s31, 1
        %s256 = smul.addr %s255, 8
        %s257 = scalar_lea.vmem [#allocation3], %s256
        %p258 = pneg %p44
        %p259 = pneg %p41
        %p260 = pneg %p65
        %p261 = pneg %p62
        %p262 = pneg %p86
        %p263 = pneg %p83
        %p264 = pneg %p107
        %p265 = pneg %p104
        %p266 = pneg %p128
        %p267 = pneg %p125
        %p268 = pneg %p154
        %p269 = pneg %p151
        %s270 = sand.u32 %s141, 1
        %s271 = scalar_lea.sflag [#allocation5], %s270
        %s272 = sand.u32 %s141, 1
        %s273 = smul.addr %s272, 8
        %s274 = scalar_lea.vmem [#allocation9], %s273
        %v276 = vld [vmem:[%s237] sm:$0xff]
        %v277 = vpack.c.bf16 %v276, %v276
        %v278 = vld [vmem:[#allocation6] sm:$0xf]
        %v279 = vld [vmem:[#allocation6 + $0x4] sm:$0xf]
        %v280 = vld [vmem:[%s2] sm:$0x1]
        %v282 = vperm.slane %v280, 0
        %v286 = vunpack.c.l.b16 %v278
        %v287 = vunpack.c.l.b16 %v279
        %v288 = vpack.c.b16 %v287, %v286
        %vm290 = vcmask 130048
        %v292 = vsel %vm290, %v277, 0
        %294 = vmatpush.bf16.msra.mxu0 0
        %295 = vmatpush.bf16.msra.mxu0 0
        %296 = vmatpush.bf16.msra.mxu0 0
        %297 = vmatpush.bf16.msra.mxu0 0
        %298 = vmatpush.bf16.msra.mxu0 0
        %299 = vmatpush.bf16.msra.mxu0 0
        %300 = vmatpush.bf16.msra.mxu0 0
        %301 = vmatpush.bf16.msra.mxu0 %v288
        %302 = vmatmul.bf16.gmra.mxu0 %v292
        %v303 = vpop.f32.mrf.mxu0
        %v304 = vadd.f32 %v282, %v303
        %v305 = vpop.f32.mrf.mxu0
        %306 = vdwg.mxu0
        %vm307 = vcmask 785408
        %308 = vst.msk [vmem:[#allocation2] sm:$0xff] %vm307, %v304
        %v309 = vld [vmem:[#allocation2] sm:$0xff]
        %v310 = vpack.c.bf16 %v309, %v309
        %v312 = vunpack.c.l.b16 %v310
        %v313 = vpack.c.b16 %v312, %v312
        %314 = vrot.lane.b32.xlu0 %v313, 96
        %v315 = vpop.permute.xlu0 %314
        %vm316 = vcmask 64512
        %v318 = vsel %vm316, %v310, 0
        %v321 = vsel %vm316, %v315, 0
        %323 = vmatpush.bf16.xpose.msra.mxu0 0
        %324 = vmatpush.bf16.xpose.msra.mxu0 0
        %325 = vmatpush.bf16.xpose.msra.mxu0 0
        %326 = vmatpush.bf16.xpose.msra.mxu0 0
        %327 = vmatpush.bf16.xpose.msra.mxu0 0
        %328 = vmatpush.bf16.xpose.msra.mxu0 0
        %329 = vmatpush.bf16.xpose.msra.mxu0 0
        %330 = vmatpush.bf16.xpose.msra.mxu0 %v321
        %331 = vmatmul.bf16.gmra.mxu0 %v318
        %v332 = vpop.f32.mrf.mxu0
        %v333 = vadd.f32 0.0, %v332
        %v334 = vpop.f32.mrf.mxu0
        %335 = vdwg.mxu0
        %v336 = vsel %vm316, %v333, -inf
        %337 = vmax.xlane.f32.xlu0 %v336
        %v338 = vpop.xlane.xlu0 %337
        %v339 = vsub.f32 %v333, %v338
        %v340 = vmul.f32 %v339, 1.442695
        %v341 = vpow.pop %v340
        %v342 = vsel %vm316, %v341, 0.0
        %343 = vadd.xlane.f32.xlu0 %v342
        %v344 = vpop.xlane.xlu0 %343
        %v345 = vrcp.pop %v344
        %v346 = vmul.f32 %v341, %v345
        %v347 = vpack.c.bf16 %v346, %v346
        %348 = vrot.lane.b32.xlu0 %v313, 64
        %v349 = vpop.permute.xlu0 %348
        %v351 = vsel %vm316, %v347, 0
        %vm353 = vcmask 1043456
        %v355 = vsel %vm353, %v349, 0
        %357 = vmatpush.bf16.msra.mxu0 0
        %358 = vmatpush.bf16.msra.mxu0 0
        %359 = vmatpush.bf16.msra.mxu0 0
        %360 = vmatpush.bf16.msra.mxu0 0
        %361 = vmatpush.bf16.msra.mxu0 0
        %362 = vmatpush.bf16.msra.mxu0 0
        %363 = vmatpush.bf16.msra.mxu0 0
        %364 = vmatpush.bf16.msra.mxu0 %v355
        %365 = vmatmul.bf16.gmra.mxu0 %v351
        %v366 = vpop.f32.mrf.mxu0
        %v367 = vadd.f32 0.0, %v366
        %v368 = vpop.f32.mrf.mxu0
        %369 = vdwg.mxu0
        %v370 = vadd.f32 %v309, %v367
        %371 = vrot.lane.b32.xlu0 %v313, 120
        %v372 = vpop.permute.xlu0 %371
        %373 = vrot.lane.b32.xlu0 %v313, 88
        %v374 = vpop.permute.xlu0 %373
        %v376 = vsel %vm316, %v372, 0
        %v379 = vsel %vm316, %v374, 0
        %381 = vmatpush.bf16.xpose.msra.mxu0 0
        %382 = vmatpush.bf16.xpose.msra.mxu0 0
        %383 = vmatpush.bf16.xpose.msra.mxu0 0
        %384 = vmatpush.bf16.xpose.msra.mxu0 0
        %385 = vmatpush.bf16.xpose.msra.mxu0 0
        %386 = vmatpush.bf16.xpose.msra.mxu0 0
        %387 = vmatpush.bf16.xpose.msra.mxu0 0
        %388 = vmatpush.bf16.xpose.msra.mxu0 %v379
        %389 = vmatmul.bf16.gmra.mxu0 %v376
        %v390 = vpop.f32.mrf.mxu0
        %v391 = vadd.f32 0.0, %v390
        %v392 = vpop.f32.mrf.mxu0
        %393 = vdwg.mxu0
        %v394 = vsel %vm316, %v391, -inf
        %395 = vmax.xlane.f32.xlu0 %v394
        %v396 = vpop.xlane.xlu0 %395
        %v397 = vsub.f32 %v391, %v396
        %v398 = vmul.f32 %v397, 1.442695
        %v399 = vpow.pop %v398
        %v400 = vsel %vm316, %v399, 0.0
        %401 = vadd.xlane.f32.xlu0 %v400
        %v402 = vpop.xlane.xlu0 %401
        %v403 = vrcp.pop %v402
        %v404 = vmul.f32 %v399, %v403
        %v405 = vpack.c.bf16 %v404, %v404
        %406 = vrot.lane.b32.xlu0 %v313, 56
        %v407 = vpop.permute.xlu0 %406
        %v409 = vsel %vm316, %v405, 0
        %v412 = vsel %vm353, %v407, 0
        %414 = vmatpush.bf16.msra.mxu0 0
        %415 = vmatpush.bf16.msra.mxu0 0
        %416 = vmatpush.bf16.msra.mxu0 0
        %417 = vmatpush.bf16.msra.mxu0 0
        %418 = vmatpush.bf16.msra.mxu0 0
        %419 = vmatpush.bf16.msra.mxu0 0
        %420 = vmatpush.bf16.msra.mxu0 0
        %421 = vmatpush.bf16.msra.mxu0 %v412
        %422 = vmatmul.bf16.gmra.mxu0 %v409
        %v423 = vpop.f32.mrf.mxu0
        %v424 = vadd.f32 0.0, %v423
        %v425 = vpop.f32.mrf.mxu0
        %426 = vdwg.mxu0
        %428 = vrot.lane.b32.xlu0 %v424, 8
        %v429 = vpop.permute.xlu0 %428
        %v431 = vadd.f32 %v309, %v429
        %432 = vrot.lane.b32.xlu0 %v313, 112
        %v433 = vpop.permute.xlu0 %432
        %434 = vrot.lane.b32.xlu0 %v313, 80
        %v435 = vpop.permute.xlu0 %434
        %v437 = vsel %vm316, %v433, 0
        %v440 = vsel %vm316, %v435, 0
        %442 = vmatpush.bf16.xpose.msra.mxu0 0
        %443 = vmatpush.bf16.xpose.msra.mxu0 0
        %444 = vmatpush.bf16.xpose.msra.mxu0 0
        %445 = vmatpush.bf16.xpose.msra.mxu0 0
        %446 = vmatpush.bf16.xpose.msra.mxu0 0
        %447 = vmatpush.bf16.xpose.msra.mxu0 0
        %448 = vmatpush.bf16.xpose.msra.mxu0 0
        %449 = vmatpush.bf16.xpose.msra.mxu0 %v440
        %450 = vmatmul.bf16.gmra.mxu0 %v437
        %v451 = vpop.f32.mrf.mxu0
        %v452 = vadd.f32 0.0, %v451
        %v453 = vpop.f32.mrf.mxu0
        %454 = vdwg.mxu0
        %v455 = vsel %vm316, %v452, -inf
        %456 = vmax.xlane.f32.xlu0 %v455
        %v457 = vpop.xlane.xlu0 %456
        %v458 = vsub.f32 %v452, %v457
        %v459 = vmul.f32 %v458, 1.442695
        %v460 = vpow.pop %v459
        %v461 = vsel %vm316, %v460, 0.0
        %462 = vadd.xlane.f32.xlu0 %v461
        %v463 = vpop.xlane.xlu0 %462
        %v464 = vrcp.pop %v463
        %v465 = vmul.f32 %v460, %v464
        %v466 = vpack.c.bf16 %v465, %v465
        %467 = vrot.lane.b32.xlu0 %v313, 48
        %v468 = vpop.permute.xlu0 %467
        %v470 = vsel %vm316, %v466, 0
        %v473 = vsel %vm353, %v468, 0
        %475 = vmatpush.bf16.msra.mxu0 0
        %476 = vmatpush.bf16.msra.mxu0 0
        %477 = vmatpush.bf16.msra.mxu0 0
        %478 = vmatpush.bf16.msra.mxu0 0
        %479 = vmatpush.bf16.msra.mxu0 0
        %480 = vmatpush.bf16.msra.mxu0 0
        %481 = vmatpush.bf16.msra.mxu0 0
        %482 = vmatpush.bf16.msra.mxu0 %v473
        %483 = vmatmul.bf16.gmra.mxu0 %v470
        %v484 = vpop.f32.mrf.mxu0
        %v485 = vadd.f32 0.0, %v484
        %v486 = vpop.f32.mrf.mxu0
        %487 = vdwg.mxu0
        %489 = vrot.lane.b32.xlu0 %v485, 16
        %v490 = vpop.permute.xlu0 %489
        %v492 = vadd.f32 %v309, %v490
        %493 = vrot.lane.b32.xlu0 %v313, 104
        %v494 = vpop.permute.xlu0 %493
        %495 = vrot.lane.b32.xlu0 %v313, 72
        %v496 = vpop.permute.xlu0 %495
        %v498 = vsel %vm316, %v494, 0
        %v501 = vsel %vm316, %v496, 0
        %503 = vmatpush.bf16.xpose.msra.mxu0 0
        %504 = vmatpush.bf16.xpose.msra.mxu0 0
        %505 = vmatpush.bf16.xpose.msra.mxu0 0
        %506 = vmatpush.bf16.xpose.msra.mxu0 0
        %507 = vmatpush.bf16.xpose.msra.mxu0 0
        %508 = vmatpush.bf16.xpose.msra.mxu0 0
        %509 = vmatpush.bf16.xpose.msra.mxu0 0
        %510 = vmatpush.bf16.xpose.msra.mxu0 %v501
        %511 = vmatmul.bf16.gmra.mxu0 %v498
        %v512 = vpop.f32.mrf.mxu0
        %v513 = vadd.f32 0.0, %v512
        %v514 = vpop.f32.mrf.mxu0
        %515 = vdwg.mxu0
        %v516 = vsel %vm316, %v513, -inf
        %517 = vmax.xlane.f32.xlu0 %v516
        %v518 = vpop.xlane.xlu0 %517
        %v519 = vsub.f32 %v513, %v518
        %v520 = vmul.f32 %v519, 1.442695
        %v521 = vpow.pop %v520
        %v522 = vsel %vm316, %v521, 0.0
        %523 = vadd.xlane.f32.xlu0 %v522
        %v524 = vpop.xlane.xlu0 %523
        %v525 = vrcp.pop %v524
        %v526 = vmul.f32 %v521, %v525
        %v527 = vpack.c.bf16 %v526, %v526
        %528 = vrot.lane.b32.xlu0 %v313, 40
        %v529 = vpop.permute.xlu0 %528
        %v531 = vsel %vm316, %v527, 0
        %v534 = vsel %vm353, %v529, 0
        %536 = vmatpush.bf16.msra.mxu0 0
        %537 = vmatpush.bf16.msra.mxu0 0
        %538 = vmatpush.bf16.msra.mxu0 0
        %539 = vmatpush.bf16.msra.mxu0 0
        %540 = vmatpush.bf16.msra.mxu0 0
        %541 = vmatpush.bf16.msra.mxu0 0
        %542 = vmatpush.bf16.msra.mxu0 0
        %543 = vmatpush.bf16.msra.mxu0 %v534
        %544 = vmatmul.bf16.gmra.mxu0 %v531
        %v545 = vpop.f32.mrf.mxu0
        %v546 = vadd.f32 0.0, %v545
        %v547 = vpop.f32.mrf.mxu0
        %548 = vdwg.mxu0
        %550 = vrot.lane.b32.xlu0 %v546, 24
        %v551 = vpop.permute.xlu0 %550
        %v553 = vadd.f32 %v309, %v551
        %v554 = vsel %vm316, %v370, %v431
        %v555 = vsel %vm290, %v554, %v492
        %vm556 = vcmask 195584
        %v557 = vsel %vm556, %v555, %v553
        %v558 = vpack.c.bf16 %v557, %v557
        %v559 = vld [vmem:[#allocation8] sm:$0xf]
        %v560 = vld [vmem:[#allocation8 + $0x4] sm:$0xf]
        %v561 = vld [vmem:[#allocation8 + $0x8] sm:$0xf]
        %v562 = vld [vmem:[#allocation8 + $0xc] sm:$0xf]
        %v563 = vld [vmem:[%s4] sm:$0x1]
        %v565 = vperm.slane %v563, 0
        %v571 = vunpack.c.l.b16 %v559
        %v572 = vunpack.c.l.b16 %v560
        %v573 = vunpack.c.l.b16 %v561
        %v574 = vunpack.c.l.b16 %v562
        %v575 = vpack.c.b16 %v572, %v571
        %v576 = vpack.c.b16 %v574, %v573
        %vm579 = vcmask 261120
        %v581 = vsel %vm579, %v558, 0
        %583 = vmatpush.bf16.msra.mxu0 0
        %584 = vmatpush.bf16.msra.mxu0 0
        %585 = vmatpush.bf16.msra.mxu0 0
        %586 = vmatpush.bf16.msra.mxu0 0
        %587 = vmatpush.bf16.msra.mxu0 0
        %588 = vmatpush.bf16.msra.mxu0 0
        %589 = vmatpush.bf16.msra.mxu0 %v576
        %590 = vmatpush.bf16.msra.mxu0 %v575
        %591 = vmatmul.bf16.gmra.mxu0 %v581
        %v592 = vpop.f32.mrf.mxu0
        %v593 = vadd.f32 %v565, %v592
        %v594 = vpop.f32.mrf.mxu0
        %595 = vdwg.mxu0
        %v596 = vmax.f32 %v593, 0.0
        %v597 = vadd.f32 %v557, %v596
        %598 = vst.msk [vmem:[%s274] sm:$0xff] %vm579, %v597
        %s599 = sand.u32 %s141, 1
        %s600 = scalar_lea.sflag [#allocation5], %s599
        %s601 = sand.u32 %s141, 1
        %s602 = smul.addr %s601, 8
        %s603 = scalar_lea.vmem [#allocation9], %s602
        // Predicated region
        $region53: #{tpu_custom_call.1} parent=39 // pred_check
          %p604 = pneg %p151
        $region54: #{tpu_custom_call.1} parent=39 // pred_check_branch
          %606 = sbr.rel (%p604) target = $region56
        $region55: #{tpu_custom_call.1} parent=39 // pred_region
          %608 = vsyncadd %s600, 0
          %s609 = smul.addr %s23, 8
          %s610 = scalar_lea.hbm %s5, %s609
          %s612 = sshll.u32 %s603, 4
          %s613 = int_to_ptr.vmem [resolvable:$true] %s612
          %s614 = sshll.u32 %s610, 4
          %s615 = int_to_ptr.hbm [resolvable:$true] %s614
          %617 = dma.vmem_to_hbm [thread:$0]  %s613, 128, %s615, %s600
        $region56: #{tpu_custom_call.1} parent=39 // pred_fallthru
          _
      $region40: #{tpu_custom_call.1} parent=5 // pred_fallthru
        _
      %p618 = scmp.le.s32.totalorder 2, %s18
      // Predicated region
      $region57: #{tpu_custom_call.1} parent=5 // pred_check
        %p619 = pneg %p618
      $region58: #{tpu_custom_call.1} parent=5 // pred_check_branch
        %621 = sbr.rel (%p619) target = $region60
      $region59: #{tpu_custom_call.1} parent=5 // pred_region
        %s622 = ssub.s32 %s18, 2
        // Predicated region
        $region61: #{tpu_custom_call.1} parent=59 // pred_check
          %p623 = pneg %p157
        $region62: #{tpu_custom_call.1} parent=59 // pred_check_branch
          %625 = sbr.rel (%p623) target = $region64
        $region63: #{tpu_custom_call.1} parent=59 // pred_region
          %s626 = sand.u32 %s142, 1
          %s627 = scalar_lea.sflag [#allocation5], %s626
          %s628 = sand.u32 %s142, 1
          %s629 = smul.addr %s628, 8
          %s630 = scalar_lea.vmem [#allocation9], %s629
          %632 = dma.done %s627, 128
        $region64: #{tpu_custom_call.1} parent=59 // pred_fallthru
          _
      $region60: #{tpu_custom_call.1} parent=5 // pred_fallthru
        _
    $region6: #{tpu_custom_call.1} parent=1 // loop_footer
      %s22 = sadd.s32 1, %s18
    $region7: #{tpu_custom_call.1} parent=1 // loop_footer_branch
      %17 = sbr.rel target = $region3
    $region8: #{tpu_custom_call.1} parent=1 // loop_exit
      _
    %633 = vsyncpa [#allocation4], 1
    %s634 = scalar_lea.sflag [#allocation4], 1
    %635 = vsyncpa %s634, 1
    %636 = vsyncpa [#allocation7], 1
    %637 = vsyncpa [#allocation5], 1
    %s638 = scalar_lea.sflag [#allocation5], 1
    %639 = vsyncpa %s638, 1

</llo_original>
